<compile_context>
chip_gen: v5e
topology: v5e:2x2
jax: 0.10.0
libtpu: 0.0.40
codegen_flags: <defaults>
</compile_context>

<pallas_src>
import functools

import jax
import jax.numpy as jnp
import numpy as np
from jax.experimental import pallas as pl
from jax.experimental.pallas import tpu as pltpu


def _round_up(x, m):
    return (x + m - 1) // m * m


# -----------------------------------------------------------------------------
# One-time probe: determine the pltpu.roll rotation convention so the gate
# realignment shifts are correct regardless of direction convention.
# -----------------------------------------------------------------------------
_ROLL_IS_JNP_LIKE = None


def _roll_probe_kernel(x_ref, o_ref):
    o_ref[...] = pltpu.roll(x_ref[...], 1, axis=1)


def _roll_matches_jnp():
    """True iff pltpu.roll(x, s)[..., i] == x[..., (i - s) % n] (jnp.roll)."""
    global _ROLL_IS_JNP_LIKE
    if _ROLL_IS_JNP_LIKE is None:
        x = jax.lax.broadcasted_iota(jnp.float32, (8, 128), 1)
        vmem = pl.BlockSpec(memory_space=pltpu.MemorySpace.VMEM)
        r = pl.pallas_call(
            _roll_probe_kernel,
            out_shape=jax.ShapeDtypeStruct((8, 128), jnp.float32),
            in_specs=[vmem],
            out_specs=vmem,
        )(x)
        _ROLL_IS_JNP_LIKE = bool(float(jax.device_get(r)[0, 0]) == 127.0)
    return _ROLL_IS_JNP_LIKE


# -----------------------------------------------------------------------------
# Kernel
# -----------------------------------------------------------------------------
def _lstm_mlp_kernel(x_ref, p_ref, out_ref, *, num_layers, hidden, seq_len,
                     batch, d0_rows, offs, sh_f, sh_g, sh_o):
    """Full LSTM_MLP forward; x and the single packed parameter array are
    VMEM-resident, output is a lane-dense (B, 4H) tile (true fc output in the
    first output_dim*output_len lanes)."""
    H = hidden
    G = 4 * H
    T = seq_len
    B = batch
    L = num_layers
    del B  # batch is implied by the shapes; kept for documentation
    moff = offs["misc"]

    # Lane-constant affine turning tanh(pre-scaled gates) into (i, f, g, o):
    #   i/f/o = 0.5*tanh(z/2) + 0.5 = sigmoid(z),   g = tanh(z).
    post_scale = p_ref[moff + L + 1: moff + L + 2, :]   # (1, 4H)
    post_shift = p_ref[moff + L + 2: moff + L + 3, :]   # (1, 4H)

    h = None
    hs = None
    for layer in range(L):
        if layer == 0:
            inp = x_ref[...]                       # (T*B, d0_rows)
            din = d0_rows
        else:
            # Previous layer's hidden states carried as values (no VMEM scratch
            # round trip); junk lanes [H, 4H) hit zero weight rows below.
            inp = jnp.concatenate(hs, axis=0)      # (T*B, 4H)
            din = G

        off_ih = offs[f"w_ih_{layer}"]
        off_hh = offs[f"w_hh_{layer}"]

        # Hoisted input projection with folded (b_ih + b_hh) bias: one MXU
        # matmul for all T steps, kept off the serial recurrence.
        xw = (jnp.dot(inp, p_ref[off_ih: off_ih + din, :],
                      preferred_element_type=jnp.float32)
              + p_ref[moff + layer: moff + layer + 1, :]).reshape(T, -1, G)

        # Recurrent weight, zero-padded to 4H input rows so the 128-lane h can
        # feed the MXU directly (zero rows annihilate the junk lanes exactly).
        w_hh = p_ref[off_hh: off_hh + G, :]        # (4H, 4H)

        hs = []
        c = None
        h = None
        for t in range(T):
            if t == 0:
                # h_{-1} = c_{-1} = 0: skip the recurrent matmul and the
                # forget-gate contribution entirely.
                z = xw[0]
            else:
                z = xw[t] + jnp.dot(h, w_hh, preferred_element_type=jnp.float32)

            # One full-width tanh (EUP) + one affine (VPU): a = [i | f | g | o].
            a = jnp.tanh(z) * post_scale + post_shift

            # Explicit lane realignment (XLU) instead of 32-lane sub-slices.
            g_al = pltpu.roll(a, sh_g, axis=1)     # g -> lanes [0, H)
            o_al = pltpu.roll(a, sh_o, axis=1)     # o -> lanes [0, H)
            if t == 0:
                c = a * g_al                       # i*g        (lanes [0,H) valid)
            else:
                f_al = pltpu.roll(a, sh_f, axis=1)  # f -> lanes [0, H)
                c = f_al * c + a * g_al            # f*c + i*g
            h = o_al * jnp.tanh(c)                 # o*tanh(c); junk stays bounded

            if layer + 1 < L:
                hs.append(h)

    # fc head on hn[-1]; W_fc is zero-padded to (4H, 4H) so the 128-wide h is
    # used directly and the output store is lane-dense.
    off_fc = offs["w_fc"]
    out_ref[...] = (jnp.dot(h, p_ref[off_fc: off_fc + G, :],
                            preferred_element_type=jnp.float32)
                    + p_ref[moff + L: moff + L + 1, :]).astype(out_ref.dtype)


# -----------------------------------------------------------------------------
# Host-side parameter packing (all transforms exact)
# -----------------------------------------------------------------------------
def _pack_params(params, *, input_dim, hidden_dim, output_dim, output_len,
                 num_layers):
    """Packs all weights / biases / lane constants into ONE (rows, 4H) array.

      * gate pre-scale [.5, .5, 1, .5] folded into W_ih / W_hh / b (exact),
      * W_hh, W_ih (layers > 0), W_fc zero-padded to 4H input rows,
      * b_fc zero-padded to 4H lanes,
      * every segment 8-row aligned -> clean sublane-aligned static slices.
    """
    H = hidden_dim
    G = 4 * H
    O = output_dim * output_len
    pre = np.concatenate([np.full(H, 0.5), np.full(H, 0.5),
                          np.ones(H), np.full(H, 0.5)]).astype(np.float32)
    post_shift = np.concatenate([np.full(H, 0.5), np.full(H, 0.5),
                                 np.zeros(H), np.full(H, 0.5)]).astype(np.float32)

    segs, offs = [], {}
    cursor = 0

    def add(name, arr):
        nonlocal cursor
        r = _round_up(arr.shape[0], 8)
        buf = np.zeros((r, G), np.float32)
        buf[:arr.shape[0], :arr.shape[1]] = arr
        offs[name] = cursor
        cursor += r
        segs.append(buf)

    d0_rows = _round_up(input_dim, 8)
    for l in range(num_layers):
        w_ih = np.asarray(params[f"w_ih_{l}"], np.float32) * pre[None, :]
        w_hh = np.asarray(params[f"w_hh_{l}"], np.float32) * pre[None, :]
        if l == 0:
            w_ih = np.pad(w_ih, ((0, d0_rows - w_ih.shape[0]), (0, 0)))
        else:
            w_ih = np.pad(w_ih, ((0, G - w_ih.shape[0]), (0, 0)))
        w_hh = np.pad(w_hh, ((0, G - w_hh.shape[0]), (0, 0)))
        add(f"w_ih_{l}", w_ih)
        add(f"w_hh_{l}", w_hh)

    w_fc = np.zeros((G, G), np.float32)
    w_fc[:H, :O] = np.asarray(params["w_fc"], np.float32)
    add("w_fc", w_fc)

    misc = []
    for l in range(num_layers):
        misc.append(np.asarray(params[f"b_{l}"], np.float32).reshape(1, G)
                    * pre[None, :])
    b_fc = np.zeros((1, G), np.float32)
    b_fc[0, :O] = np.asarray(params["b_fc"], np.float32).reshape(-1)
    misc += [b_fc, pre[None, :], post_shift[None, :]]
    add("misc", np.concatenate(misc, axis=0))

    return jnp.asarray(np.concatenate(segs, axis=0)), offs, d0_rows


# -----------------------------------------------------------------------------
# Wrapper
# -----------------------------------------------------------------------------
def lstm_mlp_forward(x, params, *, hidden_dim, output_dim, output_len,
                     num_layers):
    """x: (B, C, N, T) float32  ->  (B, output_len, output_dim, 1)."""
    B, C, N, T = x.shape
    D = C * N
    H = hidden_dim
    G = 4 * H
    O = output_dim * output_len

    packed, offs, d0_rows = _pack_params(
        params, input_dim=D, hidden_dim=H, output_dim=output_dim,
        output_len=output_len, num_layers=num_layers)

    # (B,C,N,T) -> (B, C*N, T) -> (T, B, C*N) -> (T*B, C*N): time-major rows so
    # the hoisted per-layer projection is one lane-dense MXU matmul and the
    # per-step pick inside the kernel is a leading-axis index.
    # Matches PyTorch: x_tm[t*B + b] == x.view(B, C*N, T).permute(0,2,1)[b, t].
    x_tm = jnp.transpose(x.reshape(B, D, T), (2, 0, 1)).reshape(T * B, D)
    if d0_rows != D:
        x_tm = jnp.pad(x_tm, ((0, 0), (0, d0_rows - D)))

    jnp_like = _roll_matches_jnp()

    def to_front(src_lane):
        # Roll shift that moves lane index `src_lane` to lane 0.
        s = src_lane % G
        if s == 0:
            return 0
        return (G - s) if jnp_like else s

    kernel = functools.partial(
        _lstm_mlp_kernel, num_layers=num_layers, hidden=H, seq_len=T, batch=B,
        d0_rows=d0_rows, offs=offs,
        sh_f=to_front(H), sh_g=to_front(2 * H), sh_o=to_front(3 * H))

    vmem = pl.BlockSpec(memory_space=pltpu.MemorySpace.VMEM)
    out = pl.pallas_call(
        kernel,
        out_shape=jax.ShapeDtypeStruct((B, G), jnp.float32),
        in_specs=[vmem, vmem],
        out_specs=vmem,
        # Single grid-less call: T*L serial steps, < 300 KiB resident.  For
        # realistic batch sizes add grid=(B_tiles,) with
        # dimension_semantics=("parallel",) to use both v7x TensorCores.
    )(x_tm, packed)

    # out.view(B, output_len, output_dim).unsqueeze(-1); lanes [O, 4H) are the
    # zero-padded fc columns.
    return out[:, :O].reshape(B, output_len, output_dim, 1)


# -----------------------------------------------------------------------------
# Pure-JAX reference (mirrors the PyTorch LSTM_MLP forward) + init
# -----------------------------------------------------------------------------
def _ref_forward(x, params, *, hidden_dim, output_dim, output_len, num_layers):
    B, C, N, T = x.shape
    D = C * N
    H = hidden_dim
    xs = jnp.transpose(x.reshape(B, D, T), (0, 2, 1))   # (B, T, D)

    seq = xs
    h = None
    for l in range(num_layers):
        w_ih = params[f"w_ih_{l}"]
        w_hh = params[f"w_hh_{l}"]
        b = params[f"b_{l}"]
        h = jnp.zeros((B, H), jnp.float32)
        c = jnp.zeros((B, H), jnp.float32)
        outs = []
        for t in range(T):
            gates = seq[:, t, :] @ w_ih + h @ w_hh + b
            i = jax.nn.sigmoid(gates[:, 0 * H:1 * H])
            f = jax.nn.sigmoid(gates[:, 1 * H:2 * H])
            g = jnp.tanh(gates[:, 2 * H:3 * H])
            o = jax.nn.sigmoid(gates[:, 3 * H:4 * H])
            c = f * c + i * g
            h = o * jnp.tanh(c)
            outs.append(h)
        seq = jnp.stack(outs, axis=1)                   # (B, T, H)
    out = h @ params["w_fc"] + params["b_fc"]
    return out.reshape(B, output_len, output_dim, 1)


def init_params(key, input_dim, hidden_dim, output_dim, output_len, num_layers):
    """Mimics nn.LSTM / nn.Linear default init: U(-1/sqrt(fan), 1/sqrt(fan)).
    LSTM weights stored transposed as (in_features, 4H), gate order (i,f,g,o);
    the two LSTM biases are pre-folded into a single (1, 4H) constant (exact)."""
    params = {}
    H = hidden_dim
    keys = jax.random.split(key, 4 * num_layers + 2)
    bound_h = 1.0 / np.sqrt(H)
    for l in range(num_layers):
        d_in = input_dim if l == 0 else H
        kw_ih, kw_hh, kb_ih, kb_hh = keys[4 * l: 4 * l + 4]
        params[f"w_ih_{l}"] = jax.random.uniform(
            kw_ih, (d_in, 4 * H), jnp.float32, -bound_h, bound_h)
        params[f"w_hh_{l}"] = jax.random.uniform(
            kw_hh, (H, 4 * H), jnp.float32, -bound_h, bound_h)
        b_ih = jax.random.uniform(kb_ih, (1, 4 * H), jnp.float32,
                                  -bound_h, bound_h)
        b_hh = jax.random.uniform(kb_hh, (1, 4 * H), jnp.float32,
                                  -bound_h, bound_h)
        params[f"b_{l}"] = b_ih + b_hh
    O = output_dim * output_len
    bound_fc = 1.0 / np.sqrt(H)
    params["w_fc"] = jax.random.uniform(keys[-2], (H, O), jnp.float32,
                                        -bound_fc, bound_fc)
    params["b_fc"] = jax.random.uniform(keys[-1], (1, O), jnp.float32,
                                        -bound_fc, bound_fc)
    return params


if __name__ == "__main__":
    # Small shapes consistent with the module: x is (B, C, N, T).
    B, C, N, T = 2, 4, 4, 8
    INPUT_DIM = C * N            # 16
    HIDDEN_DIM = 32              # 4H = 128 -> gate vector exactly fills the lanes
    OUTPUT_DIM = 2
    OUTPUT_LEN = 3
    NUM_LAYERS = 2

    key = jax.random.PRNGKey(0)
    k_x, k_p = jax.random.split(key)
    x = jax.random.normal(k_x, (B, C, N, T), jnp.float32)
    params = init_params(k_p, INPUT_DIM, HIDDEN_DIM, OUTPUT_DIM, OUTPUT_LEN,
                         NUM_LAYERS)

    out = lstm_mlp_forward(x, params,
                           hidden_dim=HIDDEN_DIM, output_dim=OUTPUT_DIM,
                           output_len=OUTPUT_LEN, num_layers=NUM_LAYERS)
    out = jax.block_until_ready(out)

    ref = jax.block_until_ready(
        _ref_forward(x, params,
                     hidden_dim=HIDDEN_DIM, output_dim=OUTPUT_DIM,
                     output_len=OUTPUT_LEN, num_layers=NUM_LAYERS))

    np.testing.assert_allclose(np.asarray(out), np.asarray(ref),
                               rtol=1e-4, atol=1e-4)
    assert out.shape == (B, OUTPUT_LEN, OUTPUT_DIM, 1)
    print("KERNEL_OK")
</pallas_src>

<mosaic_0001>
module attributes {stable_mosaic.version = 11 : i64} {
  func.func @_roll_probe_kernel(%arg0: memref<8x128xf32, #tpu.memory_space<vmem>>, %arg1: memref<8x128xf32, #tpu.memory_space<vmem>>) attributes {dimension_semantics = [], scalar_prefetch = 0 : i64, scratch_operands = 0 : i64, tpu.core_type = #tpu.core_type<tc>} {
    %c0 = arith.constant 0 : index
    %c0_0 = arith.constant 0 : index
    %0 = vector.load %arg0[%c0, %c0_0] : memref<8x128xf32, #tpu.memory_space<vmem>>, vector<8x128xf32>
    %c1_i32 = arith.constant 1 : i32
    %1 = tpu.dynamic_rotate %0 by %c1_i32 dim 1 : vector<8x128xf32>, i32 -> vector<8x128xf32>
    %c0_1 = arith.constant 0 : index
    %c0_2 = arith.constant 0 : index
    %2 = vector.load %arg1[%c0_1, %c0_2] : memref<8x128xf32, #tpu.memory_space<vmem>>, vector<8x128xf32>
    tpu.vector_store %arg1[%c0_1, %c0_2], %1 {strides = array<i32>} : memref<8x128xf32, #tpu.memory_space<vmem>>, vector<8x128xf32>,
    return
  }
}

</mosaic_0001>

<llo_original>
// kernel: tpu_custom_call.1
$region0: #{tpu_custom_call.1}
  #allocation0 [shape = 'u32[]', space=smem, size = 0x4, offset = 0x4, fixed_abs, tag = 'smem constant byte address 0x4 - core index']
  #allocation1 [shape = 'u32[72,128]{1,0:T(1,128)}', space=vmem, size = 0x9000, scoped, tag = 'internal scratch']
  %s0 = inlined_call_operand.hbm [shape: f32[8,128], index: 0, kind: input, shape index: {}]
  %s1 = inlined_call_operand.hbm [shape: f32[8,128], index: 1, kind: output, shape index: {}]
  %s2 = sld [smem:[#allocation0]]
  $region18: #{tpu_custom_call.1} parent=0
    _
  %s4 = ssub.s32 1, %s2
  %s5 = scalar_select 0, %s4, %s2
  $region1: #{tpu_custom_call.1} parent=0
    #allocation2 [shape = 'u8[4096]{0}', space=vmem, size = 0x1000, scoped, tag = 'input window, operand 0, single buffered']
    #allocation3 [shape = 's32[1]{0}', space=sflag, size = 0x4, scoped, tag = 'scoped memory for tpu_custom_call.1']
    #allocation4 [shape = 's32[1]{0}', space=sflag, size = 0x4, scoped, tag = 'scoped memory for tpu_custom_call.1']
    #allocation5 [shape = 'u8[4096]{0}', space=vmem, size = 0x1000, scoped, tag = 'output window, operand 0, single buffered']
    %6 = vsyncpa [#allocation3], 0
    %7 = vsyncpa [#allocation4], 0
    // Predicated region
    $region2: #{tpu_custom_call.1} parent=1 // pred_check
      _
    $region3: #{tpu_custom_call.1} parent=1 // pred_check_branch
      %9 = sbr.rel (0) target = $region5
    $region4: #{tpu_custom_call.1} parent=1 // pred_region
      %11 = vsyncadd [#allocation3], 0
      %s13 = sshll.u32 %s0, 4
      %s14 = int_to_ptr.hbm [resolvable:$true] %s13
      %s15 = sshll.u32 [#allocation2], 4
      %s16 = int_to_ptr.vmem [resolvable:$true] %s15
      %18 = dma.hbm_to_vmem [thread:$0]  %s14, 128, %s16, [#allocation3]
    $region5: #{tpu_custom_call.1} parent=1 // pred_fallthru
      _
    // Predicated region
    $region6: #{tpu_custom_call.1} parent=1 // pred_check
      _
    $region7: #{tpu_custom_call.1} parent=1 // pred_check_branch
      %20 = sbr.rel (0) target = $region9
    $region8: #{tpu_custom_call.1} parent=1 // pred_region
      %22 = dma.done [#allocation3], 128
    $region9: #{tpu_custom_call.1} parent=1 // pred_fallthru
      _
    %v23 = vld [vmem:[#allocation2] sm:$0xff]
    %24 = vrot.lane.b32.xlu0 %v23, 1
    %v25 = vpop.permute.xlu0 %24
    %26 = vst [vmem:[#allocation5] sm:$0xff] %v25
    // Predicated region
    $region10: #{tpu_custom_call.1} parent=1 // pred_check
      _
    $region11: #{tpu_custom_call.1} parent=1 // pred_check_branch
      %28 = sbr.rel (0) target = $region13
    $region12: #{tpu_custom_call.1} parent=1 // pred_region
      %30 = vsyncadd [#allocation4], 0
      %s32 = sshll.u32 [#allocation5], 4
      %s33 = int_to_ptr.vmem [resolvable:$true] %s32
      %s34 = sshll.u32 %s1, 4
      %s35 = int_to_ptr.hbm [resolvable:$true] %s34
      %37 = dma.vmem_to_hbm [thread:$0]  %s33, 128, %s35, [#allocation4]
    $region13: #{tpu_custom_call.1} parent=1 // pred_fallthru
      _
    // Predicated region
    $region14: #{tpu_custom_call.1} parent=1 // pred_check
      _
    $region15: #{tpu_custom_call.1} parent=1 // pred_check_branch
      %39 = sbr.rel (0) target = $region17
    $region16: #{tpu_custom_call.1} parent=1 // pred_region
      %41 = dma.done [#allocation4], 128
    $region17: #{tpu_custom_call.1} parent=1 // pred_fallthru
      _
    %42 = vsyncpa [#allocation3], 1
    %43 = vsyncpa [#allocation4], 1

</llo_original>
